<compile_context>
chip_gen: v7x
topology: tpu7x:2x2x1
jax: 0.10.0
libtpu: 0.0.40
codegen_flags: <defaults>
</compile_context>

<pallas_src>
import functools

import jax
import jax.numpy as jnp
from jax.experimental import pallas as pl
from jax.experimental.pallas import tpu as pltpu

FEAT = 100    # feature width fixed by the module: torch.zeros(size, 100)
LANES = 128   # lane-dense (padded) storage width


def _activations_kernel(counter_ref, x_ref, act_in_ref, act_out_ref, copy_sem):
    # counter_ref : SMEM (1,) int32   -- scalar-prefetched running counter
    # x_ref       : HBM (bs, LANES)   -- this batch, lane-padded, raw HBM ref
    # act_in_ref  : HBM ref, aliased to act_out_ref (never read; alias only)
    # act_out_ref : HBM (size, LANES) -- activations buffer, updated in place
    # copy_sem    : DMA completion semaphore
    del act_in_ref  # present only to carry the input/output alias
    bs = x_ref.shape[0]
    size = act_out_ref.shape[0]
    start = counter_ref[0]

    # Bounds guard: skip the store instead of issuing an OOB HBM DMA.
    @pl.when(jnp.logical_and(start >= 0, start + bs <= size))
    def _():
        # Single direct HBM->HBM DMA: x rows -> activations[start:start+bs, :]
        cp = pltpu.make_async_copy(
            x_ref, act_out_ref.at[pl.ds(start, bs), :], copy_sem)
        cp.start()
        cp.wait()


@functools.partial(jax.jit, donate_argnums=(2,))
def activations_update(counter, x, activations_padded):
    """In-place: activations_padded[counter:counter+bs, :feat] = x."""
    bs, feat = x.shape
    size, lanes = activations_padded.shape
    x_pad = x if feat == lanes else jnp.pad(x, ((0, 0), (0, lanes - feat)))

    grid_spec = pltpu.PrefetchScalarGridSpec(
        num_scalar_prefetch=1,
        grid=(1,),
        in_specs=[
            # x: raw HBM ref -> no auto HBM->VMEM staging DMA.
            pl.BlockSpec(memory_space=pl.ANY),
            # activations: raw HBM ref -> no auto-DMA of the destination.
            pl.BlockSpec(memory_space=pl.ANY),
        ],
        out_specs=pl.BlockSpec(memory_space=pl.ANY),
        scratch_shapes=[pltpu.SemaphoreType.DMA(())],
    )

    return pl.pallas_call(
        _activations_kernel,
        out_shape=jax.ShapeDtypeStruct(activations_padded.shape,
                                       activations_padded.dtype),
        grid_spec=grid_spec,
        # Alias activations (flat input idx 2: counter=0, x=1, act=2) to the
        # single output so untouched rows are preserved with no copy.
        input_output_aliases={2: 0},
        compiler_params=pltpu.CompilerParams(
            dimension_semantics=("arbitrary",)),
    )(counter, x_pad, activations_padded)


class ActivationsPallas:
    """Functional mirror of the PyTorch `Activations` module."""

    def __init__(self, size, batch_size):
        self.size = size
        self.batch_size = batch_size
        # Lane-dense backing store (feature dim padded 100 -> 128).
        self._act_padded = jnp.zeros((size, LANES), jnp.float32)
        self.outputs = jnp.zeros((size,), jnp.float32)
        self.labels = []
        self.types = []
        self.counter = 0

    @property
    def activations(self):
        return self._act_padded[:, :FEAT]

    def forward(self, x):
        counter = jnp.array([self.counter], jnp.int32)
        self._act_padded = activations_update(counter, x, self._act_padded)
        self.counter += self.batch_size
        return x  # identity passthrough; no kernel copy needed

    def add_labels(self, labels):
        for l in labels:
            if l not in self.labels:
                self.types.append(l)
            self.labels.append(l)

    def add_outputs(self, outs):
        self.outputs = jax.lax.dynamic_update_slice(
            self.outputs, jnp.asarray(outs, self.outputs.dtype),
            (self.counter - self.batch_size,))

    # TODO(synk): `visualize` (UMAP + matplotlib plotting) is host-side
    # analysis with no Pallas/TPU-kernel equivalent; intentionally omitted.


if __name__ == "__main__":
    size, batch_size = 16, 8
    key = jax.random.PRNGKey(0)
    k1, k2 = jax.random.split(key)

    mod = ActivationsPallas(size, batch_size)

    x0 = jax.random.normal(k1, (batch_size, FEAT), jnp.float32)
    x1 = jax.random.normal(k2, (batch_size, FEAT), jnp.float32)

    y0 = mod.forward(x0)
    # After the first step, rows [batch_size:] must still be zero -- this
    # verifies the input/output alias preserved untouched rows in place.
    act_after_first = jax.device_get(mod.activations)

    y1 = mod.forward(x1)
    jax.block_until_ready((y0, y1, mod._act_padded))

    # Reference (PyTorch semantics).
    ref = jnp.zeros((size, FEAT), jnp.float32)
    ref = ref.at[0:batch_size].set(x0)
    ref = ref.at[batch_size:2 * batch_size].set(x1)

    assert jnp.array_equal(y0, x0), "forward must return x unchanged"
    assert jnp.array_equal(y1, x1), "forward must return x unchanged"
    assert jnp.allclose(act_after_first[:batch_size], jax.device_get(x0)), \
        "first batch rows mismatch"
    assert not act_after_first[batch_size:].any(), \
        "aliased (untouched) rows must remain zero"
    assert jnp.allclose(mod.activations, ref), "activations buffer mismatch"
    assert mod.counter == 2 * batch_size

    print("KERNEL_OK")
</pallas_src>

<mosaic_0001>
module attributes {stable_mosaic.version = 11 : i64} {
  func.func @_activations_kernel(%arg0: i32, %arg1: memref<1xi32, #tpu.memory_space<smem>>, %arg2: memref<8x128xf32, #tpu.memory_space<any>>, %arg3: memref<16x128xf32, #tpu.memory_space<any>>, %arg4: memref<16x128xf32, #tpu.memory_space<any>>, %arg5: memref<!tpu.dma_semaphore, #tpu.memory_space<semaphore_mem>>) attributes {dimension_semantics = [#tpu.dimension_semantics<arbitrary>], iteration_bounds = array<i64: 1>, scalar_prefetch = 1 : i64, scratch_operands = 1 : i64, tpu.core_type = #tpu.core_type<tc>, window_params = [{}, {}, {}]} {
    %c0 = arith.constant 0 : index
    %0 = memref.load %arg1[%c0] : memref<1xi32, #tpu.memory_space<smem>>
    %c0_i32 = arith.constant 0 : i32
    %1 = arith.cmpi sge, %0, %c0_i32 : i32
    %c8_i32 = arith.constant 8 : i32
    %2 = arith.addi %0, %c8_i32 : i32
    %c16_i32 = arith.constant 16 : i32
    %3 = arith.cmpi sle, %2, %c16_i32 : i32
    %4 = arith.andi %1, %3 : i1
    %5 = arith.extui %4 : i1 to i32
    %c0_i32_0 = arith.constant 0 : i32
    %6 = arith.cmpi ne, %5, %c0_i32_0 : i32
    scf.if %6 {
      %c0_i32_1 = arith.constant 0 : i32
      %7 = tpu.memref_slice %arg4[%0, %c0_i32_1] : memref<16x128xf32, #tpu.memory_space<any>> -> memref<8x128xf32, #tpu.memory_space<any>>
      tpu.enqueue_dma source(%arg2 : memref<8x128xf32, #tpu.memory_space<any>>) target(%7 : memref<8x128xf32, #tpu.memory_space<any>>) target_semaphore(%arg5 : memref<!tpu.dma_semaphore, #tpu.memory_space<semaphore_mem>>)
      %c0_i32_2 = arith.constant 0 : i32
      %8 = tpu.memref_slice %arg4[%0, %c0_i32_2] : memref<16x128xf32, #tpu.memory_space<any>> -> memref<8x128xf32, #tpu.memory_space<any>>
      tpu.wait_dma2 semaphore(%arg5 : memref<!tpu.dma_semaphore, #tpu.memory_space<semaphore_mem>>) src(%arg2 : memref<8x128xf32, #tpu.memory_space<any>>) dst(%8 : memref<8x128xf32, #tpu.memory_space<any>>)
    } else {
    }
    return
  }
}

</mosaic_0001>

<llo_original>
// kernel: activations_update.1
$region0: #{activations_update.1}
  #allocation0 [shape = 'u32[]', space=smem, size = 0x4, offset = 0x4, fixed_abs, tag = 'smem constant byte address 0x4 - core index']
  #allocation1 [shape = 'u32[144,128]{1,0:T(1,128)}', space=vmem, size = 0x12000, scoped, tag = 'internal scratch']
  #allocation2 [shape = 's32[1]{0}', space=sflag, size = 0x4, scoped, tag = 'scratch operand']
  #allocation3 [shape = 's32[1]{0}', space=sflag, size = 0x4, scoped, tag = 'scoped memory for activations_update.1']
  #allocation4 [shape = 's32[1]{0:T(128)S(6)}', space=smem, size = 0x200, scoped, tag = 'prefetched SMEM operand 0']
  #allocation5 [shape = 's32[]', space=sflag, size = 0x4, offset = 0, fixed_abs, tag = 'sflag constant byte address 0x0 - dummy sync flag']
  #allocation6 [shape = 's32[]', space=sflag, size = 0x4, offset = 0, fixed_abs, tag = 'sflag constant byte address 0x0 - dummy sync flag']
  #allocation7 [shape = 'u32[]', space=smem, size = 0x4, offset = 0x44, fixed_abs, tag = 'smem constant byte address 0x44 - assertion arg 0']
  #allocation8 [shape = 'u32[]', space=smem, size = 0x4, offset = 0x48, fixed_abs, tag = 'smem constant byte address 0x48 - assertion arg 1']
  %s0 = inlined_call_operand.<no memory space> [shape: s32[1], index: 0, kind: input, shape index: {}]
  %s1 = inlined_call_operand.vmem [shape: f32[8,128], index: 1, kind: input, shape index: {}]
  %s2 = inlined_call_operand.hbm [shape: f32[16,128], index: 2, kind: input, shape index: {}, may-alias: {2,3}]
  %s3 = inlined_call_operand.hbm [shape: f32[16,128], index: 3, kind: output, shape index: {}, may-alias: {2,3}]
  %s4 = sld [smem:[#allocation0]]
  $region10: #{activations_update.1} parent=0
    _
  %s6 = ssub.s32 1, %s4
  %s7 = scalar_select 0, %s6, %s4
  %8 = sst [smem:[#allocation4]] %s0
  %s9 = sld [smem:[#allocation4]]
  %p10 = scmp.ge.s32.totalorder %s9, 0
  %s11 = sadd.s32 %s9, 8
  %p12 = scmp.le.s32.totalorder %s11, 16
  %p13 = pnand %p10, %p12
  %p14 = pneg %p13
  // Predicated region
  $region2: #{activations_update.1} parent=0 // pred_check
    _
  $region3: #{activations_update.1} parent=0 // pred_check_branch
    %16 = sbr.rel (%p13) target = $region5
  $region4: #{activations_update.1} parent=0 // pred_region
    %s17 = smul.addr %s9, 16
    %s18 = scalar_lea.hbm %s3, %s17
    // Predicated region
    $region6: #{activations_update.1} parent=4 // pred_check
      _
    $region7: #{activations_update.1} parent=4 // pred_check_branch
      %20 = sbr.rel target = $region9
    $region8: #{activations_update.1} parent=4 // pred_region
      %21 = sst [smem:[#allocation7]] [#allocation6]
      %22 = sst [smem:[#allocation8]] [#allocation5]
    $region9: #{activations_update.1} parent=4 // pred_fallthru
      _
    %24 = shalt.err (0)
    %s26 = sshll.u32 %s1, 4
    %s27 = int_to_ptr.vmem [resolvable:$true] %s26
    %29 = dma.vmem_to_hbm [thread:$0]  %s27, 128, %s18, [#allocation2]
    %s30 = smul.u32 8, 1
    %s31 = sshll.u32 %s30, 4
    %32 = dma.done [#allocation2], %s31
  $region5: #{activations_update.1} parent=0 // pred_fallthru
    _
  %33 = vsyncmov [#allocation2]
  %s34 = vpop.sfrf %33
  %p35 = scmp.eq.s32.totalorder %s34, 0
  %p36 = pneg %p35
  %38 = shalt.err (%p36)

</llo_original>
